<compile_context>
chip_gen: v5e
topology: v5e:2x2
jax: 0.10.0
libtpu: 0.0.40
codegen_flags: <defaults>
</compile_context>

<pallas_src>
import jax
import jax.numpy as jnp
from jax.experimental import pallas as pl
from jax.experimental.pallas import tpu as pltpu


def _ranking_loss_kernel(zi_ref, zt_ref, lab_ref,
                         zi_halo_ref, zt_halo_ref, lab_halo_ref,
                         out_ref):
    zi = zi_ref[...].astype(jnp.float32)    # (TB, D)  z_image rows of this tile
    zt = zt_ref[...].astype(jnp.float32)    # (TB, D)  z_text rows of this tile
    li = lab_ref[...].astype(jnp.float32)   # (TB, L)  labels of this tile

    tb = zi.shape[0]

    # "next row" within the tile: sublane rotation on the XLU (roll by -1 == roll by tb-1).
    zi_n = pltpu.roll(zi, shift=tb - 1, axis=0)
    zt_n = pltpu.roll(zt, shift=tb - 1, axis=0)
    li_n = pltpu.roll(li, shift=tb - 1, axis=0)

    # The neighbour of the tile's last row is the first row of the *next* tile
    # (wrapping at the end of the batch); it arrives via the small halo block.
    zi_h = zi_halo_ref[pl.ds(0, 1), :].astype(jnp.float32)    # (1, D)
    zt_h = zt_halo_ref[pl.ds(0, 1), :].astype(jnp.float32)    # (1, D)
    li_h = lab_halo_ref[pl.ds(0, 1), :].astype(jnp.float32)   # (1, L)

    row = jax.lax.broadcasted_iota(jnp.int32, (tb, 1), 0)
    is_last = row == (tb - 1)
    zi_n = jnp.where(is_last, zi_h, zi_n)
    zt_n = jnp.where(is_last, zt_h, zt_n)
    li_n = jnp.where(is_last, li_h, li_n)

    # Fused similarity differences ('dot'):
    #   d_img = dot(z_image[j], z_text[i]) - dot(z_image[i], z_text[i])
    #   d_txt = dot(z_text[j],  z_image[i]) - dot(z_image[i], z_text[i])
    d_img = jnp.sum((zi_n - zi) * zt, axis=1, keepdims=True)    # (TB, 1)
    d_txt = jnp.sum((zt_n - zt) * zi, axis=1, keepdims=True)    # (TB, 1)

    # Margin: 0 if labels identical, else max(0.5, xor_count / or_count)
    # (float abs-diff / max reformulation is exact for {0,1} multi-hot labels).
    xor_sum = jnp.sum(jnp.abs(li - li_n), axis=1, keepdims=True)     # (TB, 1)
    or_sum = jnp.sum(jnp.maximum(li, li_n), axis=1, keepdims=True)   # (TB, 1)
    safe_or = jnp.where(or_sum > 0.0, or_sum, 1.0)
    ratio = xor_sum * pl.reciprocal(safe_or, approx=True)            # divide on EUP
    margin = jnp.where(xor_sum == 0.0, 0.0, jnp.maximum(0.5, ratio))

    # relu(x) summed is equivalent to "add only if > 0"
    hinge = jnp.maximum(d_img + margin, 0.0) + jnp.maximum(d_txt + margin, 0.0)

    # Per-tile partial sum; final tiny reduction + /batch happen in the JAX wrapper.
    out_ref[...] = jnp.full((1, 1, 1), jnp.sum(hinge), dtype=jnp.float32)


def _pick_block_rows(batch, d, l, itemsize, budget_bytes=24 * 1024 * 1024):
    """Largest batch tile that divides `batch`, is a multiple of 8, and keeps the
    double-buffered working set comfortably inside scoped VMEM (sized with v7x's
    32 MiB scoped budget in mind)."""
    candidates = [tb for tb in (1024, 512, 256, 128, 64, 32, 16, 8) if batch % tb == 0]
    if not candidates:
        return batch  # small / ragged batch: fall back to a single untiled block
    for tb in candidates:
        per_buf = (2 * d + l) * tb * itemsize      # 3 tiled inputs per grid step
        if 2 * per_buf <= budget_bytes:            # x2 for double buffering
            return tb
    return candidates[-1]


def ranking_loss(z_image, z_text, labels, similarity_function="dot", block_rows=None):
    """Pallas implementation of RankingLoss.forward for similarity_function='dot'.

    Returns a float32 array of shape (1,) (matching the torch module's output shape).
    """
    if similarity_function != "dot":
        raise NotImplementedError(
            "Only the default 'dot' similarity is implemented in the Pallas kernel.")

    batch, d = z_image.shape
    l = labels.shape[1]
    itemsize = max(jnp.dtype(z_image.dtype).itemsize, jnp.dtype(labels.dtype).itemsize)

    tb = block_rows if block_rows is not None else _pick_block_rows(batch, d, l, itemsize)
    assert batch % tb == 0, (batch, tb)
    nb = batch // tb

    # Halo block: sublane-aligned chunk starting at the first row of the next tile
    # (wrapping at the last tile). Only its first row is used inside the kernel.
    halo_rows = min(8, batch)
    tile_map = lambda b: (b, 0)
    halo_map = lambda b: (((b + 1) % nb) * (tb // halo_rows), 0)

    partials = pl.pallas_call(
        _ranking_loss_kernel,
        out_shape=jax.ShapeDtypeStruct((nb, 1, 1), jnp.float32),
        grid=(nb,),
        in_specs=[
            pl.BlockSpec((tb, d), tile_map),
            pl.BlockSpec((tb, d), tile_map),
            pl.BlockSpec((tb, l), tile_map),
            pl.BlockSpec((halo_rows, d), halo_map),
            pl.BlockSpec((halo_rows, d), halo_map),
            pl.BlockSpec((halo_rows, l), halo_map),
        ],
        out_specs=pl.BlockSpec((1, 1, 1), lambda b: (b, 0, 0)),
        compiler_params=pltpu.CompilerParams(
            dimension_semantics=("parallel",),
            vmem_limit_bytes=32 * 1024 * 1024),
    )(z_image, z_text, labels, z_image, z_text, labels)

    return (jnp.sum(partials) / jnp.float32(batch)).reshape(1)


def _ranking_loss_ref(z_image, z_text, labels):
    """Pure-JAX reference mirroring the PyTorch loops (for verification)."""
    batch = z_image.shape[0]
    total = 0.0
    for i in range(batch):
        j = (i + 1) % batch
        li = labels[i].astype(jnp.int32)
        lj = labels[j].astype(jnp.int32)
        equal = jnp.all(li == lj)
        n = jnp.sum(li | lj).astype(jnp.float32)
        diff = jnp.sum(li ^ lj).astype(jnp.float32)
        margin = jnp.where(equal, 0.0,
                           jnp.maximum(0.5, diff / jnp.where(n > 0, n, 1.0)))
        paired = jnp.dot(z_image[i], z_text[i])
        imp_img = jnp.dot(z_image[j], z_text[i])
        imp_txt = jnp.dot(z_text[j], z_image[i])
        total = total + jnp.maximum(imp_img - paired + margin, 0.0)
        total = total + jnp.maximum(imp_txt - paired + margin, 0.0)
    return (total / batch).reshape(1)


if __name__ == "__main__":
    key = jax.random.PRNGKey(0)
    k1, k2, k3 = jax.random.split(key, 3)

    B, D, L = 16, 128, 16  # batch, embedding dim (full 128-lane tile), number of labels
    z_image = jax.random.normal(k1, (B, D), dtype=jnp.float32)
    z_text = jax.random.normal(k2, (B, D), dtype=jnp.float32)
    labels = (jax.random.uniform(k3, (B, L)) > 0.5).astype(jnp.float32)

    # block_rows=8 -> grid of 2 tiles: exercises the cross-tile halo and the wrap-around row.
    loss = ranking_loss(z_image, z_text, labels, block_rows=8)
    loss = jax.block_until_ready(loss)

    ref = _ranking_loss_ref(z_image, z_text, labels)
    assert loss.shape == (1,)
    # tolerance covers the intentional approx-reciprocal in the margin divide
    assert jnp.allclose(loss, ref, atol=1e-3, rtol=1e-3), (loss, ref)

    print("KERNEL_OK")
</pallas_src>

<mosaic_0001>
module attributes {stable_mosaic.version = 11 : i64} {
  func.func @_ranking_loss_kernel(%arg0: i32, %arg1: memref<8x128xf32, #tpu.memory_space<vmem>>, %arg2: memref<8x128xf32, #tpu.memory_space<vmem>>, %arg3: memref<8x16xf32, #tpu.memory_space<vmem>>, %arg4: memref<8x128xf32, #tpu.memory_space<vmem>>, %arg5: memref<8x128xf32, #tpu.memory_space<vmem>>, %arg6: memref<8x16xf32, #tpu.memory_space<vmem>>, %arg7: memref<1x1x1xf32, #tpu.memory_space<vmem>>) attributes {dimension_semantics = [#tpu.dimension_semantics<parallel>], iteration_bounds = array<i64: 2>, scalar_prefetch = 0 : i64, scratch_operands = 0 : i64, tpu.core_type = #tpu.core_type<tc>, window_params = [{transform_indices = @transform_0, window_bounds = array<i64: 8, 128>}, {transform_indices = @transform_1, window_bounds = array<i64: 8, 128>}, {transform_indices = @transform_2, window_bounds = array<i64: 8, 16>}, {transform_indices = @transform_3, window_bounds = array<i64: 8, 128>}, {transform_indices = @transform_4, window_bounds = array<i64: 8, 128>}, {transform_indices = @transform_5, window_bounds = array<i64: 8, 16>}, {transform_indices = @transform_6, window_bounds = array<i64: 1, 1, 1>}]} {
    %c0 = arith.constant 0 : index
    %c0_0 = arith.constant 0 : index
    %0 = vector.load %arg1[%c0, %c0_0] : memref<8x128xf32, #tpu.memory_space<vmem>>, vector<8x128xf32>
    %c0_1 = arith.constant 0 : index
    %c0_2 = arith.constant 0 : index
    %1 = vector.load %arg2[%c0_1, %c0_2] : memref<8x128xf32, #tpu.memory_space<vmem>>, vector<8x128xf32>
    %c0_3 = arith.constant 0 : index
    %c0_4 = arith.constant 0 : index
    %2 = vector.load %arg3[%c0_3, %c0_4] : memref<8x16xf32, #tpu.memory_space<vmem>>, vector<8x16xf32>
    %c7_i32 = arith.constant 7 : i32
    %3 = tpu.dynamic_rotate %0 by %c7_i32 dim 0 : vector<8x128xf32>, i32 -> vector<8x128xf32>
    %c7_i32_5 = arith.constant 7 : i32
    %4 = tpu.dynamic_rotate %1 by %c7_i32_5 dim 0 : vector<8x128xf32>, i32 -> vector<8x128xf32>
    %c7_i32_6 = arith.constant 7 : i32
    %5 = tpu.dynamic_rotate %2 by %c7_i32_6 dim 0 : vector<8x16xf32>, i32 -> vector<8x16xf32>
    %c0_7 = arith.constant 0 : index
    %c0_8 = arith.constant 0 : index
    %6 = vector.load %arg4[%c0_7, %c0_8] : memref<8x128xf32, #tpu.memory_space<vmem>>, vector<1x128xf32>
    %c0_9 = arith.constant 0 : index
    %c0_10 = arith.constant 0 : index
    %7 = vector.load %arg5[%c0_9, %c0_10] : memref<8x128xf32, #tpu.memory_space<vmem>>, vector<1x128xf32>
    %c0_11 = arith.constant 0 : index
    %c0_12 = arith.constant 0 : index
    %8 = vector.load %arg6[%c0_11, %c0_12] : memref<8x16xf32, #tpu.memory_space<vmem>>, vector<1x16xf32>
    %9 = tpu.iota {dimensions = array<i32: 0>} : vector<8x1xi32>
    %c7_i32_13 = arith.constant 7 : i32
    %10 = vector.broadcast %c7_i32_13 : i32 to vector<8x1xi32>
    %11 = arith.cmpi eq, %9, %10 : vector<8x1xi32>
    %12 = vector.shape_cast %11 : vector<8x1xi1> to vector<8x1xi1>
    %13 = vector.broadcast %12 : vector<8x1xi1> to vector<8x128xi1>
    %14 = vector.shape_cast %6 : vector<1x128xf32> to vector<1x128xf32>
    %15 = vector.broadcast %14 : vector<1x128xf32> to vector<8x128xf32>
    %16 = arith.select %13, %15, %3 : vector<8x128xi1>, vector<8x128xf32>
    %17 = vector.shape_cast %11 : vector<8x1xi1> to vector<8x1xi1>
    %18 = vector.broadcast %17 : vector<8x1xi1> to vector<8x128xi1>
    %19 = vector.shape_cast %7 : vector<1x128xf32> to vector<1x128xf32>
    %20 = vector.broadcast %19 : vector<1x128xf32> to vector<8x128xf32>
    %21 = arith.select %18, %20, %4 : vector<8x128xi1>, vector<8x128xf32>
    %22 = vector.shape_cast %11 : vector<8x1xi1> to vector<8x1xi1>
    %23 = vector.broadcast %22 : vector<8x1xi1> to vector<8x16xi1>
    %24 = vector.shape_cast %8 : vector<1x16xf32> to vector<1x16xf32>
    %25 = vector.broadcast %24 : vector<1x16xf32> to vector<8x16xf32>
    %26 = arith.select %23, %25, %5 : vector<8x16xi1>, vector<8x16xf32>
    %27 = arith.subf %16, %0 : vector<8x128xf32>
    %28 = arith.mulf %27, %1 : vector<8x128xf32>
    %cst = arith.constant dense<0.000000e+00> : vector<8xf32>
    %29 = vector.multi_reduction <add>, %28, %cst [1] : vector<8x128xf32> to vector<8xf32>
    %30 = vector.shape_cast %29 : vector<8xf32> to vector<8x1xf32>
    %31 = arith.subf %21, %1 : vector<8x128xf32>
    %32 = arith.mulf %31, %0 : vector<8x128xf32>
    %cst_14 = arith.constant dense<0.000000e+00> : vector<8xf32>
    %33 = vector.multi_reduction <add>, %32, %cst_14 [1] : vector<8x128xf32> to vector<8xf32>
    %34 = vector.shape_cast %33 : vector<8xf32> to vector<8x1xf32>
    %35 = arith.subf %2, %26 : vector<8x16xf32>
    %36 = math.absf %35 : vector<8x16xf32>
    %cst_15 = arith.constant dense<0.000000e+00> : vector<8xf32>
    %37 = vector.multi_reduction <add>, %36, %cst_15 [1] : vector<8x16xf32> to vector<8xf32>
    %38 = vector.shape_cast %37 : vector<8xf32> to vector<8x1xf32>
    %39 = arith.maximumf %2, %26 : vector<8x16xf32>
    %cst_16 = arith.constant dense<0.000000e+00> : vector<8xf32>
    %40 = vector.multi_reduction <add>, %39, %cst_16 [1] : vector<8x16xf32> to vector<8xf32>
    %41 = vector.shape_cast %40 : vector<8xf32> to vector<8x1xf32>
    %cst_17 = arith.constant 0.000000e+00 : f32
    %42 = vector.broadcast %cst_17 : f32 to vector<8x1xf32>
    %43 = arith.cmpf ogt, %41, %42 : vector<8x1xf32>
    %cst_18 = arith.constant 1.000000e+00 : f32
    %44 = vector.broadcast %cst_18 : f32 to vector<8x1xf32>
    %45 = arith.select %43, %41, %44 : vector<8x1xi1>, vector<8x1xf32>
    %46 = tpu.reciprocal %45 {approx = true} : vector<8x1xf32> -> vector<8x1xf32>
    %47 = arith.mulf %38, %46 : vector<8x1xf32>
    %cst_19 = arith.constant 0.000000e+00 : f32
    %48 = vector.broadcast %cst_19 : f32 to vector<8x1xf32>
    %49 = arith.cmpf oeq, %38, %48 : vector<8x1xf32>
    %cst_20 = arith.constant 5.000000e-01 : f32
    %50 = vector.broadcast %cst_20 : f32 to vector<8x1xf32>
    %51 = arith.maximumf %50, %47 : vector<8x1xf32>
    %cst_21 = arith.constant 0.000000e+00 : f32
    %52 = vector.broadcast %cst_21 : f32 to vector<8x1xf32>
    %53 = arith.select %49, %52, %51 : vector<8x1xi1>, vector<8x1xf32>
    %54 = arith.addf %30, %53 : vector<8x1xf32>
    %cst_22 = arith.constant 0.000000e+00 : f32
    %55 = vector.broadcast %cst_22 : f32 to vector<8x1xf32>
    %56 = arith.maximumf %54, %55 : vector<8x1xf32>
    %57 = arith.addf %34, %53 : vector<8x1xf32>
    %cst_23 = arith.constant 0.000000e+00 : f32
    %58 = vector.broadcast %cst_23 : f32 to vector<8x1xf32>
    %59 = arith.maximumf %57, %58 : vector<8x1xf32>
    %60 = arith.addf %56, %59 : vector<8x1xf32>
    %61 = vector.shape_cast %60 : vector<8x1xf32> to vector<1x8x1xf32>
    %cst_24 = arith.constant dense<0.000000e+00> : vector<1xf32>
    %62 = vector.multi_reduction <add>, %61, %cst_24 [1, 2] : vector<1x8x1xf32> to vector<1xf32>
    %63 = vector.shape_cast %62 : vector<1xf32> to vector<1x1x1xf32>
    %64 = vector.extract %63[0, 0, 0] : f32 from vector<1x1x1xf32>
    %65 = vector.broadcast %64 : f32 to vector<1x1x1xf32>
    %c0_25 = arith.constant 0 : index
    %c0_26 = arith.constant 0 : index
    %c0_27 = arith.constant 0 : index
    %66 = vector.load %arg7[%c0_25, %c0_26, %c0_27] : memref<1x1x1xf32, #tpu.memory_space<vmem>>, vector<1x1x1xf32>
    tpu.vector_store %arg7[%c0_25, %c0_26, %c0_27], %65 {strides = array<i32>} : memref<1x1x1xf32, #tpu.memory_space<vmem>>, vector<1x1x1xf32>,
    return
  }
  func.func @transform_0(%arg0: i32) -> (i32, i32) {
    %c0_i32 = arith.constant 0 : i32
    %c0_i32_0 = arith.constant 0 : i32
    return %arg0, %c0_i32 : i32, i32
  }
  func.func @transform_1(%arg0: i32) -> (i32, i32) {
    %c0_i32 = arith.constant 0 : i32
    %c0_i32_0 = arith.constant 0 : i32
    return %arg0, %c0_i32 : i32, i32
  }
  func.func @transform_2(%arg0: i32) -> (i32, i32) {
    %c0_i32 = arith.constant 0 : i32
    %c0_i32_0 = arith.constant 0 : i32
    return %arg0, %c0_i32 : i32, i32
  }
  func.func @transform_3(%arg0: i32) -> (i32, i32) {
    %c1_i32 = arith.constant 1 : i32
    %0 = arith.addi %arg0, %c1_i32 : i32
    %c2_i32 = arith.constant 2 : i32
    %c0_i32 = arith.constant 0 : i32
    %1 = arith.cmpi eq, %c2_i32, %c0_i32 : i32
    %c1_i32_0 = arith.constant 1 : i32
    %2 = arith.select %1, %c1_i32_0, %c2_i32 : i32
    %3 = arith.remsi %0, %2 : i32
    %c0_i32_1 = arith.constant 0 : i32
    %4 = arith.cmpi ne, %3, %c0_i32_1 : i32
    %c0_i32_2 = arith.constant 0 : i32
    %5 = arith.cmpi slt, %3, %c0_i32_2 : i32
    %c0_i32_3 = arith.constant 0 : i32
    %6 = arith.cmpi slt, %2, %c0_i32_3 : i32
    %7 = arith.xori %5, %6 : i1
    %8 = arith.andi %7, %4 : i1
    %9 = arith.addi %3, %2 : i32
    %10 = arith.select %8, %9, %3 : i32
    %c1_i32_4 = arith.constant 1 : i32
    %11 = arith.muli %10, %c1_i32_4 : i32
    %c0_i32_5 = arith.constant 0 : i32
    %c0_i32_6 = arith.constant 0 : i32
    return %11, %c0_i32_5 : i32, i32
  }
  func.func @transform_4(%arg0: i32) -> (i32, i32) {
    %c1_i32 = arith.constant 1 : i32
    %0 = arith.addi %arg0, %c1_i32 : i32
    %c2_i32 = arith.constant 2 : i32
    %c0_i32 = arith.constant 0 : i32
    %1 = arith.cmpi eq, %c2_i32, %c0_i32 : i32
    %c1_i32_0 = arith.constant 1 : i32
    %2 = arith.select %1, %c1_i32_0, %c2_i32 : i32
    %3 = arith.remsi %0, %2 : i32
    %c0_i32_1 = arith.constant 0 : i32
    %4 = arith.cmpi ne, %3, %c0_i32_1 : i32
    %c0_i32_2 = arith.constant 0 : i32
    %5 = arith.cmpi slt, %3, %c0_i32_2 : i32
    %c0_i32_3 = arith.constant 0 : i32
    %6 = arith.cmpi slt, %2, %c0_i32_3 : i32
    %7 = arith.xori %5, %6 : i1
    %8 = arith.andi %7, %4 : i1
    %9 = arith.addi %3, %2 : i32
    %10 = arith.select %8, %9, %3 : i32
    %c1_i32_4 = arith.constant 1 : i32
    %11 = arith.muli %10, %c1_i32_4 : i32
    %c0_i32_5 = arith.constant 0 : i32
    %c0_i32_6 = arith.constant 0 : i32
    return %11, %c0_i32_5 : i32, i32
  }
  func.func @transform_5(%arg0: i32) -> (i32, i32) {
    %c1_i32 = arith.constant 1 : i32
    %0 = arith.addi %arg0, %c1_i32 : i32
    %c2_i32 = arith.constant 2 : i32
    %c0_i32 = arith.constant 0 : i32
    %1 = arith.cmpi eq, %c2_i32, %c0_i32 : i32
    %c1_i32_0 = arith.constant 1 : i32
    %2 = arith.select %1, %c1_i32_0, %c2_i32 : i32
    %3 = arith.remsi %0, %2 : i32
    %c0_i32_1 = arith.constant 0 : i32
    %4 = arith.cmpi ne, %3, %c0_i32_1 : i32
    %c0_i32_2 = arith.constant 0 : i32
    %5 = arith.cmpi slt, %3, %c0_i32_2 : i32
    %c0_i32_3 = arith.constant 0 : i32
    %6 = arith.cmpi slt, %2, %c0_i32_3 : i32
    %7 = arith.xori %5, %6 : i1
    %8 = arith.andi %7, %4 : i1
    %9 = arith.addi %3, %2 : i32
    %10 = arith.select %8, %9, %3 : i32
    %c1_i32_4 = arith.constant 1 : i32
    %11 = arith.muli %10, %c1_i32_4 : i32
    %c0_i32_5 = arith.constant 0 : i32
    %c0_i32_6 = arith.constant 0 : i32
    return %11, %c0_i32_5 : i32, i32
  }
  func.func @transform_6(%arg0: i32) -> (i32, i32, i32) {
    %c0_i32 = arith.constant 0 : i32
    %c0_i32_0 = arith.constant 0 : i32
    %c0_i32_1 = arith.constant 0 : i32
    return %arg0, %c0_i32, %c0_i32_0 : i32, i32, i32
  }
}

</mosaic_0001>

<llo_original>
// kernel: tpu_custom_call.1
$region0: #{tpu_custom_call.1}
  #allocation0 [shape = 'u32[]', space=smem, size = 0x4, offset = 0x4, fixed_abs, tag = 'smem constant byte address 0x4 - core index']
  #allocation1 [shape = 'u32[72,128]{1,0:T(1,128)}', space=vmem, size = 0x9000, scoped, tag = 'internal scratch']
  %s0 = inlined_call_operand.hbm [shape: f32[16,128], index: 0, kind: input, shape index: {}]
  %s1 = inlined_call_operand.hbm [shape: f32[16,128], index: 1, kind: input, shape index: {}]
  %s2 = inlined_call_operand.hbm [shape: f32[16,16], index: 2, kind: input, shape index: {}]
  %s3 = inlined_call_operand.hbm [shape: f32[16,128], index: 3, kind: input, shape index: {}]
  %s4 = inlined_call_operand.hbm [shape: f32[16,128], index: 4, kind: input, shape index: {}]
  %s5 = inlined_call_operand.hbm [shape: f32[16,16], index: 5, kind: input, shape index: {}]
  %s6 = inlined_call_operand.vmem [shape: f32[2,1,1], index: 6, kind: output, shape index: {}]
  %s7 = sld [smem:[#allocation0]]
  $region81: #{tpu_custom_call.1} parent=0
    _
  %s9 = ssub.s32 1, %s7
  %s10 = scalar_select 0, %s9, %s7
  $region1: #{tpu_custom_call.1} parent=0
    #allocation2 [shape = 'u8[8192]{0}', space=vmem, size = 0x2000, scoped, tag = 'input window, operand 0']
    #allocation3 [shape = 's32[2]{0}', space=sflag, size = 0x8, scoped, tag = 'scoped memory for tpu_custom_call.1']
    #allocation4 [shape = 'u8[8192]{0}', space=vmem, size = 0x2000, scoped, tag = 'input window, operand 1']
    #allocation5 [shape = 's32[2]{0}', space=sflag, size = 0x8, scoped, tag = 'scoped memory for tpu_custom_call.1']
    #allocation6 [shape = 'u8[8192]{0}', space=vmem, size = 0x2000, scoped, tag = 'input window, operand 2']
    #allocation7 [shape = 'u8[8192]{0}', space=vmem, size = 0x2000, scoped, tag = 'input window, operand 3']
    #allocation8 [shape = 's32[2]{0}', space=sflag, size = 0x8, scoped, tag = 'scoped memory for tpu_custom_call.1']
    #allocation9 [shape = 'u8[8192]{0}', space=vmem, size = 0x2000, scoped, tag = 'input window, operand 4']
    #allocation10 [shape = 'u8[8192]{0}', space=vmem, size = 0x2000, scoped, tag = 'input window, operand 5']
    #allocation11 [shape = 's32[2]{0}', space=sflag, size = 0x8, scoped, tag = 'scoped memory for tpu_custom_call.1']
    %11 = vsyncpa [#allocation3], 0
    %s12 = scalar_lea.sflag [#allocation3], 1
    %13 = vsyncpa %s12, 0
    %14 = vsyncpa [#allocation5], 0
    %s15 = scalar_lea.sflag [#allocation5], 1
    %16 = vsyncpa %s15, 0
    %17 = vsyncpa [#allocation8], 0
    %s18 = scalar_lea.sflag [#allocation8], 1
    %19 = vsyncpa %s18, 0
    %20 = vsyncpa [#allocation11], 0
    %s21 = scalar_lea.sflag [#allocation11], 1
    %22 = vsyncpa %s21, 0
    loop: start=0, step=1, limit=4
    $region2: #{tpu_custom_call.1} parent=1 // loop_pre_header
      _
    $region3: #{tpu_custom_call.1} parent=1 // loop_header
      %s24 = sphi 0, %s28
      %p25 = scmp.ge.s32.totalorder %s24, 4
      %s34 = sphi 0, %s36
      %s37 = sphi 0, %s34
      %s38 = sphi 0, %s37
      %s54 = sphi 0, %s38
      %s60 = sphi 0, %s62
      %s63 = sphi 0, %s60
      %s64 = sphi 0, %s63
      %s80 = sphi 0, %s64
      %s86 = sphi 0, %s88
      %s89 = sphi 0, %s86
      %s90 = sphi 0, %s89
      %s106 = sphi 0, %s90
      %s138 = sphi 0, %s140
      %s141 = sphi 0, %s138
      %s142 = sphi 0, %s141
      %s158 = sphi 0, %s142
      %s190 = sphi 0, %s192
      %s193 = sphi 0, %s190
      %s194 = sphi 0, %s193
      %s210 = sphi 0, %s194
      %s242 = sphi 0, %s244
      %s245 = sphi 0, %s242
      %s246 = sphi 0, %s245
      %s262 = sphi 0, %s246
      %s268 = sphi 0, %s270
      %s271 = sphi 0, %s268
      %s272 = sphi 0, %s271
      %s288 = sphi 0, %s272
    $region4: #{tpu_custom_call.1} parent=1 // loop_header_branch
      %27 = sbr.rel (%p25) target = $region8
    $region5: #{tpu_custom_call.1} parent=1 // loop_body
      %s29 = ssub.s32 %s24, 1
      %s30 = ssub.s32 %s24, 2
      %s31 = sadd.s32 %s24, 1
      %s32 = ssub.s32 %s24, %s31
      %p33 = scmp.eq.s32.totalorder %s32, 0
      %s35 = sadd.s32 %s34, 1
      %s36 = scalar_select %p33, %s34, %s35
      %p39 = pneg %p33
      %p40 = scmp.eq.s32.totalorder %s24, 1
      %p41 = por %p39, %p40
      %p42 = scmp.ne.s32.totalorder %s34, %s37
      %p43 = scmp.eq.s32.totalorder %s24, 0
      %p44 = por %p42, %p43
      %p45 = scmp.ne.s32.totalorder %s34, %s37
      %p46 = scmp.eq.s32.totalorder %s29, 1
      %p47 = por %p45, %p46
      %p48 = scmp.ne.s32.totalorder %s37, %s38
      %p49 = scmp.eq.s32.totalorder %s29, 0
      %p50 = por %p48, %p49
      %p51 = scmp.ne.s32.totalorder %s37, %s38
      %p52 = scmp.eq.s32.totalorder %s30, 1
      %p53 = por %p51, %p52
      %p55 = scmp.ne.s32.totalorder %s38, %s54
      %p56 = scmp.eq.s32.totalorder %s30, 0
      %p57 = por %p55, %p56
      %s58 = ssub.s32 %s24, %s31
      %p59 = scmp.eq.s32.totalorder %s58, 0
      %s61 = sadd.s32 %s60, 1
      %s62 = scalar_select %p59, %s60, %s61
      %p65 = pneg %p59
      %p66 = scmp.eq.s32.totalorder %s24, 1
      %p67 = por %p65, %p66
      %p68 = scmp.ne.s32.totalorder %s60, %s63
      %p69 = scmp.eq.s32.totalorder %s24, 0
      %p70 = por %p68, %p69
      %p71 = scmp.ne.s32.totalorder %s60, %s63
      %p72 = scmp.eq.s32.totalorder %s29, 1
      %p73 = por %p71, %p72
      %p74 = scmp.ne.s32.totalorder %s63, %s64
      %p75 = scmp.eq.s32.totalorder %s29, 0
      %p76 = por %p74, %p75
      %p77 = scmp.ne.s32.totalorder %s63, %s64
      %p78 = scmp.eq.s32.totalorder %s30, 1
      %p79 = por %p77, %p78
      %p81 = scmp.ne.s32.totalorder %s64, %s80
      %p82 = scmp.eq.s32.totalorder %s30, 0
      %p83 = por %p81, %p82
      %s84 = ssub.s32 %s24, %s31
      %p85 = scmp.eq.s32.totalorder %s84, 0
      %s87 = sadd.s32 %s86, 1
      %s88 = scalar_select %p85, %s86, %s87
      %p91 = pneg %p85
      %p92 = scmp.eq.s32.totalorder %s24, 1
      %p93 = por %p91, %p92
      %p94 = scmp.ne.s32.totalorder %s86, %s89
      %p95 = scmp.eq.s32.totalorder %s24, 0
      %p96 = por %p94, %p95
      %p97 = scmp.ne.s32.totalorder %s86, %s89
      %p98 = scmp.eq.s32.totalorder %s29, 1
      %p99 = por %p97, %p98
      %p100 = scmp.ne.s32.totalorder %s89, %s90
      %p101 = scmp.eq.s32.totalorder %s29, 0
      %p102 = por %p100, %p101
      %p103 = scmp.ne.s32.totalorder %s89, %s90
      %p104 = scmp.eq.s32.totalorder %s30, 1
      %p105 = por %p103, %p104
      %p107 = scmp.ne.s32.totalorder %s90, %s106
      %p108 = scmp.eq.s32.totalorder %s30, 0
      %p109 = por %p107, %p108
      %s110 = sadd.s32 %s24, 1
      %p111 = scmp.lt.s32.totalorder %s110, 0
      %s112 = ssub.s32 0, %s110
      %s113 = scalar_select %p111, %s112, %s110
      %s114 = sand.u32 %s113, 1
      %s115 = ssub.s32 0, %s114
      %s116 = scalar_select %p111, %s115, %s114
      %p117 = scmp.ne.s32.totalorder %s116, 0
      %p118 = scmp.lt.s32.totalorder %s116, 0
      %p119 = pnand %p118, %p117
      %p120 = pneg %p119
      %s121 = sadd.s32 %s116, 2
      %s122 = scalar_select %p120, %s121, %s116
      %s123 = sadd.s32 %s31, 1
      %p124 = scmp.lt.s32.totalorder %s123, 0
      %s125 = ssub.s32 0, %s123
      %s126 = scalar_select %p124, %s125, %s123
      %s127 = sand.u32 %s126, 1
      %s128 = ssub.s32 0, %s127
      %s129 = scalar_select %p124, %s128, %s127
      %p130 = scmp.ne.s32.totalorder %s129, 0
      %p131 = scmp.lt.s32.totalorder %s129, 0
      %p132 = pnand %p131, %p130
      %p133 = pneg %p132
      %s134 = sadd.s32 %s129, 2
      %s135 = scalar_select %p133, %s134, %s129
      %s136 = ssub.s32 %s122, %s135
      %p137 = scmp.eq.s32.totalorder %s136, 0
      %s139 = sadd.s32 %s138, 1
      %s140 = scalar_select %p137, %s138, %s139
      %p143 = pneg %p137
      %p144 = scmp.eq.s32.totalorder %s24, 1
      %p145 = por %p143, %p144
      %p146 = scmp.ne.s32.totalorder %s138, %s141
      %p147 = scmp.eq.s32.totalorder %s24, 0
      %p148 = por %p146, %p147
      %p149 = scmp.ne.s32.totalorder %s138, %s141
      %p150 = scmp.eq.s32.totalorder %s29, 1
      %p151 = por %p149, %p150
      %p152 = scmp.ne.s32.totalorder %s141, %s142
      %p153 = scmp.eq.s32.totalorder %s29, 0
      %p154 = por %p152, %p153
      %p155 = scmp.ne.s32.totalorder %s141, %s142
      %p156 = scmp.eq.s32.totalorder %s30, 1
      %p157 = por %p155, %p156
      %p159 = scmp.ne.s32.totalorder %s142, %s158
      %p160 = scmp.eq.s32.totalorder %s30, 0
      %p161 = por %p159, %p160
      %s162 = sadd.s32 %s24, 1
      %p163 = scmp.lt.s32.totalorder %s162, 0
      %s164 = ssub.s32 0, %s162
      %s165 = scalar_select %p163, %s164, %s162
      %s166 = sand.u32 %s165, 1
      %s167 = ssub.s32 0, %s166
      %s168 = scalar_select %p163, %s167, %s166
      %p169 = scmp.ne.s32.totalorder %s168, 0
      %p170 = scmp.lt.s32.totalorder %s168, 0
      %p171 = pnand %p170, %p169
      %p172 = pneg %p171
      %s173 = sadd.s32 %s168, 2
      %s174 = scalar_select %p172, %s173, %s168
      %s175 = sadd.s32 %s31, 1
      %p176 = scmp.lt.s32.totalorder %s175, 0
      %s177 = ssub.s32 0, %s175
      %s178 = scalar_select %p176, %s177, %s175
      %s179 = sand.u32 %s178, 1
      %s180 = ssub.s32 0, %s179
      %s181 = scalar_select %p176, %s180, %s179
      %p182 = scmp.ne.s32.totalorder %s181, 0
      %p183 = scmp.lt.s32.totalorder %s181, 0
      %p184 = pnand %p183, %p182
      %p185 = pneg %p184
      %s186 = sadd.s32 %s181, 2
      %s187 = scalar_select %p185, %s186, %s181
      %s188 = ssub.s32 %s174, %s187
      %p189 = scmp.eq.s32.totalorder %s188, 0
      %s191 = sadd.s32 %s190, 1
      %s192 = scalar_select %p189, %s190, %s191
      %p195 = pneg %p189
      %p196 = scmp.eq.s32.totalorder %s24, 1
      %p197 = por %p195, %p196
      %p198 = scmp.ne.s32.totalorder %s190, %s193
      %p199 = scmp.eq.s32.totalorder %s24, 0
      %p200 = por %p198, %p199
      %p201 = scmp.ne.s32.totalorder %s190, %s193
      %p202 = scmp.eq.s32.totalorder %s29, 1
      %p203 = por %p201, %p202
      %p204 = scmp.ne.s32.totalorder %s193, %s194
      %p205 = scmp.eq.s32.totalorder %s29, 0
      %p206 = por %p204, %p205
      %p207 = scmp.ne.s32.totalorder %s193, %s194
      %p208 = scmp.eq.s32.totalorder %s30, 1
      %p209 = por %p207, %p208
      %p211 = scmp.ne.s32.totalorder %s194, %s210
      %p212 = scmp.eq.s32.totalorder %s30, 0
      %p213 = por %p211, %p212
      %s214 = sadd.s32 %s24, 1
      %p215 = scmp.lt.s32.totalorder %s214, 0
      %s216 = ssub.s32 0, %s214
      %s217 = scalar_select %p215, %s216, %s214
      %s218 = sand.u32 %s217, 1
      %s219 = ssub.s32 0, %s218
      %s220 = scalar_select %p215, %s219, %s218
      %p221 = scmp.ne.s32.totalorder %s220, 0
      %p222 = scmp.lt.s32.totalorder %s220, 0
      %p223 = pnand %p222, %p221
      %p224 = pneg %p223
      %s225 = sadd.s32 %s220, 2
      %s226 = scalar_select %p224, %s225, %s220
      %s227 = sadd.s32 %s31, 1
      %p228 = scmp.lt.s32.totalorder %s227, 0
      %s229 = ssub.s32 0, %s227
      %s230 = scalar_select %p228, %s229, %s227
      %s231 = sand.u32 %s230, 1
      %s232 = ssub.s32 0, %s231
      %s233 = scalar_select %p228, %s232, %s231
      %p234 = scmp.ne.s32.totalorder %s233, 0
      %p235 = scmp.lt.s32.totalorder %s233, 0
      %p236 = pnand %p235, %p234
      %p237 = pneg %p236
      %s238 = sadd.s32 %s233, 2
      %s239 = scalar_select %p237, %s238, %s233
      %s240 = ssub.s32 %s226, %s239
      %p241 = scmp.eq.s32.totalorder %s240, 0
      %s243 = sadd.s32 %s242, 1
      %s244 = scalar_select %p241, %s242, %s243
      %p247 = pneg %p241
      %p248 = scmp.eq.s32.totalorder %s24, 1
      %p249 = por %p247, %p248
      %p250 = scmp.ne.s32.totalorder %s242, %s245
      %p251 = scmp.eq.s32.totalorder %s24, 0
      %p252 = por %p250, %p251
      %p253 = scmp.ne.s32.totalorder %s242, %s245
      %p254 = scmp.eq.s32.totalorder %s29, 1
      %p255 = por %p253, %p254
      %p256 = scmp.ne.s32.totalorder %s245, %s246
      %p257 = scmp.eq.s32.totalorder %s29, 0
      %p258 = por %p256, %p257
      %p259 = scmp.ne.s32.totalorder %s245, %s246
      %p260 = scmp.eq.s32.totalorder %s30, 1
      %p261 = por %p259, %p260
      %p263 = scmp.ne.s32.totalorder %s246, %s262
      %p264 = scmp.eq.s32.totalorder %s30, 0
      %p265 = por %p263, %p264
      %s266 = ssub.s32 %s24, %s31
      %p267 = scmp.eq.s32.totalorder %s266, 0
      %s269 = sadd.s32 %s268, 1
      %s270 = scalar_select %p267, %s268, %s269
      %p273 = pneg %p267
      %p274 = scmp.eq.s32.totalorder %s24, 1
      %p275 = por %p273, %p274
      %p276 = scmp.ne.s32.totalorder %s268, %s271
      %p277 = scmp.eq.s32.totalorder %s24, 0
      %p278 = por %p276, %p277
      %p279 = scmp.ne.s32.totalorder %s268, %s271
      %p280 = scmp.eq.s32.totalorder %s29, 1
      %p281 = por %p279, %p280
      %p282 = scmp.ne.s32.totalorder %s271, %s272
      %p283 = scmp.eq.s32.totalorder %s29, 0
      %p284 = por %p282, %p283
      %p285 = scmp.ne.s32.totalorder %s271, %s272
      %p286 = scmp.eq.s32.totalorder %s30, 1
      %p287 = por %p285, %p286
      %p289 = scmp.ne.s32.totalorder %s272, %s288
      %p290 = scmp.eq.s32.totalorder %s30, 0
      %p291 = por %p289, %p290
      %p292 = scmp.le.s32.totalorder 1, %s24
      %p293 = scmp.lt.s32.totalorder %s24, 3
      %p294 = pnand %p292, %p293
      %p295 = pneg %p294
      // Predicated region
      $region9: #{tpu_custom_call.1} parent=5 // pred_check
        _
      $region10: #{tpu_custom_call.1} parent=5 // pred_check_branch
        %297 = sbr.rel (%p294) target = $region12
      $region11: #{tpu_custom_call.1} parent=5 // pred_region
        %s298 = ssub.s32 %s24, 1
      $region12: #{tpu_custom_call.1} parent=5 // pred_fallthru
        _
      %p299 = scmp.lt.s32.totalorder %s24, 2
      // Predicated region
      $region13: #{tpu_custom_call.1} parent=5 // pred_check
        %p300 = pneg %p299
      $region14: #{tpu_custom_call.1} parent=5 // pred_check_branch
        %302 = sbr.rel (%p300) target = $region16
      $region15: #{tpu_custom_call.1} parent=5 // pred_region
        // Predicated region
        $region17: #{tpu_custom_call.1} parent=15 // pred_check
          %p303 = pneg %p44
        $region18: #{tpu_custom_call.1} parent=15 // pred_check_branch
          %305 = sbr.rel (%p303) target = $region20
        $region19: #{tpu_custom_call.1} parent=15 // pred_region
          %s306 = sand.u32 %s34, 1
          %s307 = scalar_lea.sflag [#allocation3], %s306
          %s308 = sand.u32 %s34, 1
          %s309 = smul.addr %s308, 8
          %s310 = scalar_lea.vmem [#allocation2], %s309
          %312 = vsyncadd %s307, 0
          %s313 = smul.addr %s24, 8
          %s314 = scalar_lea.hbm %s0, %s313
          %s316 = sshll.u32 %s314, 4
          %s317 = int_to_ptr.hbm [resolvable:$true] %s316
          %s318 = sshll.u32 %s310, 4
          %s319 = int_to_ptr.vmem [resolvable:$true] %s318
          %321 = dma.hbm_to_vmem [thread:$0]  %s317, 128, %s319, %s307
        $region20: #{tpu_custom_call.1} parent=15 // pred_fallthru
          _
        // Predicated region
        $region21: #{tpu_custom_call.1} parent=15 // pred_check
          %p322 = pneg %p70
        $region22: #{tpu_custom_call.1} parent=15 // pred_check_branch
          %324 = sbr.rel (%p322) target = $region24
        $region23: #{tpu_custom_call.1} parent=15 // pred_region
          %s325 = sand.u32 %s24, 1
          %s326 = scalar_lea.sflag [#allocation5], %s325
          %s327 = sand.u32 %s60, 1
          %s328 = smul.addr %s327, 8
          %s329 = scalar_lea.vmem [#allocation4], %s328
          %331 = vsyncadd %s326, 0
          %s332 = smul.addr %s24, 8
          %s333 = scalar_lea.hbm %s1, %s332
          %s335 = sshll.u32 %s333, 4
          %s336 = int_to_ptr.hbm [resolvable:$true] %s335
          %s337 = sshll.u32 %s329, 4
          %s338 = int_to_ptr.vmem [resolvable:$true] %s337
          %340 = dma.hbm_to_vmem [thread:$0]  %s336, 128, %s338, %s326
        $region24: #{tpu_custom_call.1} parent=15 // pred_fallthru
          _
        // Predicated region
        $region25: #{tpu_custom_call.1} parent=15 // pred_check
          %p341 = pneg %p96
        $region26: #{tpu_custom_call.1} parent=15 // pred_check_branch
          %343 = sbr.rel (%p341) target = $region28
        $region27: #{tpu_custom_call.1} parent=15 // pred_region
          %s344 = sand.u32 %s24, 1
          %s345 = scalar_lea.sflag [#allocation5], %s344
          %s346 = sand.u32 %s86, 1
          %s347 = smul.addr %s346, 8
          %s348 = scalar_lea.vmem [#allocation6], %s347
          %350 = vsyncadd %s345, 0
          %s351 = smul.addr %s24, 8
          %s352 = scalar_lea.hbm %s2, %s351
          %s354 = sshll.u32 %s352, 4
          %s355 = int_to_ptr.hbm [resolvable:$true] %s354
          %s356 = sshll.u32 %s348, 4
          %s357 = int_to_ptr.vmem [resolvable:$true] %s356
          %359 = dma.hbm_to_vmem [thread:$0]  %s355, 128, %s357, %s345
        $region28: #{tpu_custom_call.1} parent=15 // pred_fallthru
          _
        // Predicated region
        $region29: #{tpu_custom_call.1} parent=15 // pred_check
          %p360 = pneg %p148
        $region30: #{tpu_custom_call.1} parent=15 // pred_check_branch
          %362 = sbr.rel (%p360) target = $region32
        $region31: #{tpu_custom_call.1} parent=15 // pred_region
          %s363 = sand.u32 %s24, 1
          %s364 = scalar_lea.sflag [#allocation8], %s363
          %s365 = sand.u32 %s138, 1
          %s366 = smul.addr %s365, 8
          %s367 = scalar_lea.vmem [#allocation7], %s366
          %s368 = sadd.s32 %s24, 1
          %p369 = scmp.lt.s32.totalorder %s368, 0
          %s370 = ssub.s32 0, %s368
          %s371 = scalar_select %p369, %s370, %s368
          %s372 = sand.u32 %s371, 1
          %s373 = ssub.s32 0, %s372
          %s374 = scalar_select %p369, %s373, %s372
          %p375 = scmp.ne.s32.totalorder %s374, 0
          %p376 = scmp.lt.s32.totalorder %s374, 0
          %p377 = pnand %p376, %p375
          %p378 = pneg %p377
          %s379 = sadd.s32 %s374, 2
          %s380 = scalar_select %p378, %s379, %s374
          %382 = vsyncadd %s364, 0
          %s383 = smul.addr %s380, 8
          %s384 = scalar_lea.hbm %s3, %s383
          %s386 = sshll.u32 %s384, 4
          %s387 = int_to_ptr.hbm [resolvable:$true] %s386
          %s388 = sshll.u32 %s367, 4
          %s389 = int_to_ptr.vmem [resolvable:$true] %s388
          %391 = dma.hbm_to_vmem [thread:$0]  %s387, 128, %s389, %s364
        $region32: #{tpu_custom_call.1} parent=15 // pred_fallthru
          _
        // Predicated region
        $region33: #{tpu_custom_call.1} parent=15 // pred_check
          %p392 = pneg %p200
        $region34: #{tpu_custom_call.1} parent=15 // pred_check_branch
          %394 = sbr.rel (%p392) target = $region36
        $region35: #{tpu_custom_call.1} parent=15 // pred_region
          %s395 = sand.u32 %s24, 1
          %s396 = scalar_lea.sflag [#allocation8], %s395
          %s397 = sand.u32 %s190, 1
          %s398 = smul.addr %s397, 8
          %s399 = scalar_lea.vmem [#allocation9], %s398
          %s400 = sadd.s32 %s24, 1
          %p401 = scmp.lt.s32.totalorder %s400, 0
          %s402 = ssub.s32 0, %s400
          %s403 = scalar_select %p401, %s402, %s400
          %s404 = sand.u32 %s403, 1
          %s405 = ssub.s32 0, %s404
          %s406 = scalar_select %p401, %s405, %s404
          %p407 = scmp.ne.s32.totalorder %s406, 0
          %p408 = scmp.lt.s32.totalorder %s406, 0
          %p409 = pnand %p408, %p407
          %p410 = pneg %p409
          %s411 = sadd.s32 %s406, 2
          %s412 = scalar_select %p410, %s411, %s406
          %414 = vsyncadd %s396, 0
          %s415 = smul.addr %s412, 8
          %s416 = scalar_lea.hbm %s4, %s415
          %s418 = sshll.u32 %s416, 4
          %s419 = int_to_ptr.hbm [resolvable:$true] %s418
          %s420 = sshll.u32 %s399, 4
          %s421 = int_to_ptr.vmem [resolvable:$true] %s420
          %423 = dma.hbm_to_vmem [thread:$0]  %s419, 128, %s421, %s396
        $region36: #{tpu_custom_call.1} parent=15 // pred_fallthru
          _
        // Predicated region
        $region37: #{tpu_custom_call.1} parent=15 // pred_check
          %p424 = pneg %p252
        $region38: #{tpu_custom_call.1} parent=15 // pred_check_branch
          %426 = sbr.rel (%p424) target = $region40
        $region39: #{tpu_custom_call.1} parent=15 // pred_region
          %s427 = sand.u32 %s242, 1
          %s428 = scalar_lea.sflag [#allocation11], %s427
          %s429 = sand.u32 %s242, 1
          %s430 = smul.addr %s429, 8
          %s431 = scalar_lea.vmem [#allocation10], %s430
          %s432 = sadd.s32 %s24, 1
          %p433 = scmp.lt.s32.totalorder %s432, 0
          %s434 = ssub.s32 0, %s432
          %s435 = scalar_select %p433, %s434, %s432
          %s436 = sand.u32 %s435, 1
          %s437 = ssub.s32 0, %s436
          %s438 = scalar_select %p433, %s437, %s436
          %p439 = scmp.ne.s32.totalorder %s438, 0
          %p440 = scmp.lt.s32.totalorder %s438, 0
          %p441 = pnand %p440, %p439
          %p442 = pneg %p441
          %s443 = sadd.s32 %s438, 2
          %s444 = scalar_select %p442, %s443, %s438
          %446 = vsyncadd %s428, 0
          %s447 = smul.addr %s444, 8
          %s448 = scalar_lea.hbm %s5, %s447
          %s450 = sshll.u32 %s448, 4
          %s451 = int_to_ptr.hbm [resolvable:$true] %s450
          %s452 = sshll.u32 %s431, 4
          %s453 = int_to_ptr.vmem [resolvable:$true] %s452
          %455 = dma.hbm_to_vmem [thread:$0]  %s451, 128, %s453, %s428
        $region40: #{tpu_custom_call.1} parent=15 // pred_fallthru
          _
      $region16: #{tpu_custom_call.1} parent=5 // pred_fallthru
        _
      %p456 = scmp.le.s32.totalorder 1, %s24
      %p457 = scmp.lt.s32.totalorder %s24, 3
      %p458 = pnand %p456, %p457
      %p459 = pneg %p458
      // Predicated region
      $region41: #{tpu_custom_call.1} parent=5 // pred_check
        _
      $region42: #{tpu_custom_call.1} parent=5 // pred_check_branch
        %461 = sbr.rel (%p458) target = $region44
      $region43: #{tpu_custom_call.1} parent=5 // pred_region
        %s462 = ssub.s32 %s24, 1
        %s463 = sand.u32 %s37, 1
        %s464 = scalar_lea.sflag [#allocation3], %s463
        %s465 = sand.u32 %s37, 1
        %s466 = smul.addr %s465, 8
        %s467 = scalar_lea.vmem [#allocation2], %s466
        // Predicated region
        $region45: #{tpu_custom_call.1} parent=43 // pred_check
          %p468 = pneg %p50
        $region46: #{tpu_custom_call.1} parent=43 // pred_check_branch
          %470 = sbr.rel (%p468) target = $region48
        $region47: #{tpu_custom_call.1} parent=43 // pred_region
          %472 = dma.done %s464, 128
        $region48: #{tpu_custom_call.1} parent=43 // pred_fallthru
          _
        %s473 = sand.u32 %s29, 1
        %s474 = scalar_lea.sflag [#allocation5], %s473
        %s475 = sand.u32 %s63, 1
        %s476 = smul.addr %s475, 8
        %s477 = scalar_lea.vmem [#allocation4], %s476
        // Predicated region
        $region49: #{tpu_custom_call.1} parent=43 // pred_check
          %p478 = pneg %p76
        $region50: #{tpu_custom_call.1} parent=43 // pred_check_branch
          %480 = sbr.rel (%p478) target = $region52
        $region51: #{tpu_custom_call.1} parent=43 // pred_region
          %482 = dma.done %s474, 128
        $region52: #{tpu_custom_call.1} parent=43 // pred_fallthru
          _
        %s483 = sand.u32 %s29, 1
        %s484 = scalar_lea.sflag [#allocation5], %s483
        %s485 = sand.u32 %s89, 1
        %s486 = smul.addr %s485, 8
        %s487 = scalar_lea.vmem [#allocation6], %s486
        // Predicated region
        $region53: #{tpu_custom_call.1} parent=43 // pred_check
          %p488 = pneg %p102
        $region54: #{tpu_custom_call.1} parent=43 // pred_check_branch
          %490 = sbr.rel (%p488) target = $region56
        $region55: #{tpu_custom_call.1} parent=43 // pred_region
          %492 = dma.done %s484, 128
        $region56: #{tpu_custom_call.1} parent=43 // pred_fallthru
          _
        %s493 = sand.u32 %s29, 1
        %s494 = scalar_lea.sflag [#allocation8], %s493
        %s495 = sand.u32 %s141, 1
        %s496 = smul.addr %s495, 8
        %s497 = scalar_lea.vmem [#allocation7], %s496
        // Predicated region
        $region57: #{tpu_custom_call.1} parent=43 // pred_check
          %p498 = pneg %p154
        $region58: #{tpu_custom_call.1} parent=43 // pred_check_branch
          %500 = sbr.rel (%p498) target = $region60
        $region59: #{tpu_custom_call.1} parent=43 // pred_region
          %502 = dma.done %s494, 128
        $region60: #{tpu_custom_call.1} parent=43 // pred_fallthru
          _
        %s503 = sand.u32 %s29, 1
        %s504 = scalar_lea.sflag [#allocation8], %s503
        %s505 = sand.u32 %s193, 1
        %s506 = smul.addr %s505, 8
        %s507 = scalar_lea.vmem [#allocation9], %s506
        // Predicated region
        $region61: #{tpu_custom_call.1} parent=43 // pred_check
          %p508 = pneg %p206
        $region62: #{tpu_custom_call.1} parent=43 // pred_check_branch
          %510 = sbr.rel (%p508) target = $region64
        $region63: #{tpu_custom_call.1} parent=43 // pred_region
          %512 = dma.done %s504, 128
        $region64: #{tpu_custom_call.1} parent=43 // pred_fallthru
          _
        %s513 = sand.u32 %s245, 1
        %s514 = scalar_lea.sflag [#allocation11], %s513
        %s515 = sand.u32 %s245, 1
        %s516 = smul.addr %s515, 8
        %s517 = scalar_lea.vmem [#allocation10], %s516
        // Predicated region
        $region65: #{tpu_custom_call.1} parent=43 // pred_check
          %p518 = pneg %p258
        $region66: #{tpu_custom_call.1} parent=43 // pred_check_branch
          %520 = sbr.rel (%p518) target = $region68
        $region67: #{tpu_custom_call.1} parent=43 // pred_region
          %522 = dma.done %s514, 128
        $region68: #{tpu_custom_call.1} parent=43 // pred_fallthru
          _
        %s523 = sand.u32 %s37, 1
        %s524 = scalar_lea.sflag [#allocation3], %s523
        %s525 = sand.u32 %s37, 1
        %s526 = smul.addr %s525, 8
        %s527 = scalar_lea.vmem [#allocation2], %s526
        %p528 = pneg %p50
        %p529 = pneg %p47
        %s530 = sand.u32 %s29, 1
        %s531 = scalar_lea.sflag [#allocation5], %s530
        %s532 = sand.u32 %s63, 1
        %s533 = smul.addr %s532, 8
        %s534 = scalar_lea.vmem [#allocation4], %s533
        %p535 = pneg %p76
        %p536 = pneg %p73
        %s537 = sand.u32 %s29, 1
        %s538 = scalar_lea.sflag [#allocation5], %s537
        %s539 = sand.u32 %s89, 1
        %s540 = smul.addr %s539, 8
        %s541 = scalar_lea.vmem [#allocation6], %s540
        %p542 = pneg %p102
        %p543 = pneg %p99
        %s544 = sand.u32 %s29, 1
        %s545 = scalar_lea.sflag [#allocation8], %s544
        %s546 = sand.u32 %s141, 1
        %s547 = smul.addr %s546, 8
        %s548 = scalar_lea.vmem [#allocation7], %s547
        %p549 = pneg %p154
        %p550 = pneg %p151
        %s551 = sand.u32 %s29, 1
        %s552 = scalar_lea.sflag [#allocation8], %s551
        %s553 = sand.u32 %s193, 1
        %s554 = smul.addr %s553, 8
        %s555 = scalar_lea.vmem [#allocation9], %s554
        %p556 = pneg %p206
        %p557 = pneg %p203
        %s558 = sand.u32 %s245, 1
        %s559 = scalar_lea.sflag [#allocation11], %s558
        %s560 = sand.u32 %s245, 1
        %s561 = smul.addr %s560, 8
        %s562 = scalar_lea.vmem [#allocation10], %s561
        %p563 = pneg %p258
        %p564 = pneg %p255
        %p565 = pneg %p284
        %p566 = pneg %p281
        %p567 = scmp.lt.s32.totalorder %s29, 1
        %s568 = scalar_select %p567, %s29, 1
        %s569 = scalar_lea.vmem %s6, %s568
        %s570 = sadd.s32 %s29, 1
        %p571 = scmp.lt.s32.totalorder %s570, 0
        %s572 = ssub.s32 0, %s570
        %s573 = scalar_select %p571, %s572, %s570
        %s574 = sand.u32 %s573, 1
        %s575 = ssub.s32 0, %s574
        %s576 = scalar_select %p571, %s575, %s574
        %p577 = scmp.ne.s32.totalorder %s576, 0
        %p578 = scmp.lt.s32.totalorder %s576, 0
        %p579 = pnand %p578, %p577
        %p580 = pneg %p579
        %s581 = sadd.s32 %s576, 2
        %s582 = scalar_select %p580, %s581, %s576
        %s583 = sadd.s32 %s29, 1
        %p584 = scmp.lt.s32.totalorder %s583, 0
        %s585 = ssub.s32 0, %s583
        %s586 = scalar_select %p584, %s585, %s583
        %s587 = sand.u32 %s586, 1
        %s588 = ssub.s32 0, %s587
        %s589 = scalar_select %p584, %s588, %s587
        %p590 = scmp.ne.s32.totalorder %s589, 0
        %p591 = scmp.lt.s32.totalorder %s589, 0
        %p592 = pnand %p591, %p590
        %p593 = pneg %p592
        %s594 = sadd.s32 %s589, 2
        %s595 = scalar_select %p593, %s594, %s589
        %s596 = sadd.s32 %s29, 1
        %p597 = scmp.lt.s32.totalorder %s596, 0
        %s598 = ssub.s32 0, %s596
        %s599 = scalar_select %p597, %s598, %s596
        %s600 = sand.u32 %s599, 1
        %s601 = ssub.s32 0, %s600
        %s602 = scalar_select %p597, %s601, %s600
        %p603 = scmp.ne.s32.totalorder %s602, 0
        %p604 = scmp.lt.s32.totalorder %s602, 0
        %p605 = pnand %p604, %p603
        %p606 = pneg %p605
        %s607 = sadd.s32 %s602, 2
        %s608 = scalar_select %p606, %s607, %s602
        %p609 = scmp.lt.s32.totalorder %s29, 1
        %s610 = scalar_select %p609, %s29, 1
        %s611 = scalar_lea.vmem %s6, %s610
        %v612 = vld [vmem:[%s467] sm:$0xff]
        %v613 = vld [vmem:[%s477] sm:$0xff]
        %v614 = vld [vmem:[%s487] sm:$0xff]
        %v615 = vrot.slane %v612, 1
        %v616 = vrot.slane %v613, 1
        %v617 = vrot.slane %v614, 1
        %v618 = vld [vmem:[%s497] sm:$0x1]
        %v619 = vld [vmem:[%s507] sm:$0x1]
        %v620 = vld [vmem:[%s517] sm:$0x1]
        %v621 = vlaneseq
        %v622 = vshrl.u32 %v621, 7
        %vm623 = vcmp.eq.s32.totalorder %v622, 7
        %v624 = vsel %vm623, 1, 0
        %vm625 = vcmp.eq.s32.totalorder %v624, 1
        %v626 = vperm.slane %v618, 0
        %v627 = vsel %vm625, %v626, %v615
        %v628 = vperm.slane %v619, 0
        %v629 = vsel %vm625, %v628, %v616
        %v630 = vperm.slane %v620, 0
        %v631 = vsel %vm625, %v630, %v617
        %v632 = vsub.f32 %v627, %v612
        %v633 = vmul.f32 %v632, %v613
        %634 = vadd.xlane.f32.xlu0 %v633
        %v635 = vpop.xlane.xlu0 %634
        %v636 = vsub.f32 %v629, %v613
        %v637 = vmul.f32 %v636, %v612
        %638 = vadd.xlane.f32.xlu0 %v637
        %v639 = vpop.xlane.xlu0 %638
        %v640 = vsub.f32 %v614, %v631
        %v641 = vand.u32 2147483647, %v640
        %vm642 = vcmask 130048
        %v643 = vsel %vm642, %v641, 0.0
        %644 = vadd.xlane.f32.xlu0 %v643
        %v645 = vpop.xlane.xlu0 %644
        %v646 = vmax.f32 %v614, %v631
        %v647 = vsel %vm642, %v646, 0.0
        %648 = vadd.xlane.f32.xlu0 %v647
        %v649 = vpop.xlane.xlu0 %648
        %vm650 = vcmp.gt.f32.partialorder %v649, 0.0
        %v651 = vsel %vm650, %v649, 1.0
        %v652 = vrcp.pop %v651
        %v653 = vmul.f32 %v645, %v652
        %vm654 = vcmp.eq.f32.partialorder %v645, 0.0
        %v655 = vmax.f32 %v653, 0.5
        %v656 = vsel %vm654, 0.0, %v655
        %v657 = vadd.f32 %v635, %v656
        %v658 = vmax.f32 %v657, 0.0
        %v659 = vadd.f32 %v639, %v656
        %v660 = vmax.f32 %v659, 0.0
        %v661 = vadd.f32 %v658, %v660
        %vm662 = vcmask 7168
        %v663 = vsel %vm662, %v661, 0.0
        %664 = vadd.xlane.f32.xlu0 %v663
        %v665 = vpop.xlane.xlu0 %664
        %v666 = vrot.slane %v665, 4
        %v667 = vadd.f32 %v665, %v666
        %v668 = vrot.slane %v667, 2
        %v669 = vadd.f32 %v667, %v668
        %v670 = vrot.slane %v669, 1
        %v671 = vadd.f32 %v669, %v670
        %s672 = vtos %v671
        %v673 = vstv %s672
        %vm674 = vcmask 0
        %675 = vst.msk [vmem:[%s611] sm:$0x1] %vm674, %v673
        %p676 = scmp.lt.s32.totalorder %s29, 1
        %s677 = scalar_select %p676, %s29, 1
        %s678 = scalar_lea.vmem %s6, %s677
        // Predicated region
        $region69: #{tpu_custom_call.1} parent=43 // pred_check
          %p679 = pneg %p281
        $region70: #{tpu_custom_call.1} parent=43 // pred_check_branch
          %681 = sbr.rel (%p679) target = $region72
        $region71: #{tpu_custom_call.1} parent=43 // pred_region
          _
        $region72: #{tpu_custom_call.1} parent=43 // pred_fallthru
          _
      $region44: #{tpu_custom_call.1} parent=5 // pred_fallthru
        _
      %p682 = scmp.le.s32.totalorder 2, %s24
      // Predicated region
      $region73: #{tpu_custom_call.1} parent=5 // pred_check
        %p683 = pneg %p682
      $region74: #{tpu_custom_call.1} parent=5 // pred_check_branch
        %685 = sbr.rel (%p683) target = $region76
      $region75: #{tpu_custom_call.1} parent=5 // pred_region
        %s686 = ssub.s32 %s24, 2
        // Predicated region
        $region77: #{tpu_custom_call.1} parent=75 // pred_check
          %p687 = pneg %p287
        $region78: #{tpu_custom_call.1} parent=75 // pred_check_branch
          %689 = sbr.rel (%p687) target = $region80
        $region79: #{tpu_custom_call.1} parent=75 // pred_region
          %p690 = scmp.lt.s32.totalorder %s30, 1
          %s691 = scalar_select %p690, %s30, 1
          %s692 = scalar_lea.vmem %s6, %s691
        $region80: #{tpu_custom_call.1} parent=75 // pred_fallthru
          _
      $region76: #{tpu_custom_call.1} parent=5 // pred_fallthru
        _
    $region6: #{tpu_custom_call.1} parent=1 // loop_footer
      %s28 = sadd.s32 1, %s24
    $region7: #{tpu_custom_call.1} parent=1 // loop_footer_branch
      %23 = sbr.rel target = $region3
    $region8: #{tpu_custom_call.1} parent=1 // loop_exit
      _
    %693 = vsyncpa [#allocation3], 1
    %s694 = scalar_lea.sflag [#allocation3], 1
    %695 = vsyncpa %s694, 1
    %696 = vsyncpa [#allocation5], 1
    %s697 = scalar_lea.sflag [#allocation5], 1
    %698 = vsyncpa %s697, 1
    %699 = vsyncpa [#allocation8], 1
    %s700 = scalar_lea.sflag [#allocation8], 1
    %701 = vsyncpa %s700, 1
    %702 = vsyncpa [#allocation11], 1
    %s703 = scalar_lea.sflag [#allocation11], 1
    %704 = vsyncpa %s703, 1

</llo_original>
